<compile_context>
chip_gen: v7x
topology: tpu7x:2x2x1
jax: 0.10.0
libtpu: 0.0.40
codegen_flags: <defaults>
</compile_context>

<pallas_src>
import functools
import math
from typing import NamedTuple

import jax
import jax.numpy as jnp
from jax.experimental import pallas as pl
from jax.experimental.pallas import tpu as pltpu

_INV_SQRT2 = 0.7071067811865476
_SQRT_2_OVER_PI = 0.7978845608028654


def _gelu(x, approx=False):
    if approx:
        # tanh approximation -> EUP (otherwise idle bundle slot).
        return 0.5 * x * (1.0 + jnp.tanh(_SQRT_2_OVER_PI * (x + 0.044715 * x * x * x)))
    # PyTorch nn.GELU() default: exact erf-based GELU (computed in f32).
    return 0.5 * x * (1.0 + jax.lax.erf(x * _INV_SQRT2))


def _round_up(x, m):
    return ((x + m - 1) // m) * m


def _cdiv(a, b):
    return -(-a // b)


def _vmem_capacity_bytes():
    try:
        return int(pltpu.get_tpu_info().vmem_capacity_bytes)
    except Exception:
        return 64 * 1024 * 1024  # conservative fallback (v7x per-TensorCore)


# ----------------------------------------------------------------------------- kernel


def feedforward_kernel(x_ref, w1_ref, b1_ref, w2_ref, b2_ref, o_ref, acc_ref,
                       *, hid_chunk, approx_gelu):
    # x_ref:  (tile_n, pin)   row tile of the flattened (padded) input
    # w1_ref: (pin, phid)     whole padded W1, resident (single-buffered)
    # b1_ref: (1, phid)       f32 bias
    # w2_ref: (phid, pout)    whole padded W2, resident (single-buffered)
    # b2_ref: (1, pout)       f32 bias
    # acc_ref:(tile_n, pout)  f32 VMEM accumulator scratch
    x = x_ref[...]
    phid = w1_ref.shape[1]
    # Initialize the f32 accumulator with the output bias.
    acc_ref[...] = jnp.broadcast_to(b2_ref[...], acc_ref.shape)
    # Chunk the hidden dim so the f32 intermediate stays small (no giant VMEM spills);
    # GELU is fused with each chunk's second matmul. hid_chunk divides phid (static).
    for lo in range(0, phid, hid_chunk):
        h = jnp.dot(x, w1_ref[:, lo:lo + hid_chunk],
                    preferred_element_type=jnp.float32)
        h = _gelu(h + b1_ref[:, lo:lo + hid_chunk], approx_gelu)
        acc_ref[...] += jnp.dot(h.astype(w2_ref.dtype), w2_ref[lo:lo + hid_chunk, :],
                                preferred_element_type=jnp.float32)
    o_ref[...] = acc_ref[...].astype(o_ref.dtype)


# ----------------------------------------------------------------------------- params


class FFParams(NamedTuple):
    w1p: jax.Array      # (pin, phid)  compute dtype, zero-padded
    b1p: jax.Array      # (1, phid)    f32, zero-padded
    w2p: jax.Array      # (phid, pout) compute dtype, zero-padded
    b2p: jax.Array      # (1, pout)    f32, zero-padded
    input_dim: int
    dim: int
    output_dim: int


def prepare_params(w1, b1, w2, b2, *, compute_dtype=jnp.bfloat16):
    """Pad/cast weights once (hoisted out of the per-call hot path)."""
    input_dim, dim = w1.shape
    output_dim = w2.shape[1]
    pin = _round_up(input_dim, 128)
    phid = _round_up(dim, 128)
    pout = _round_up(output_dim, 128)
    w1p = jnp.pad(w1.astype(compute_dtype), ((0, pin - input_dim), (0, phid - dim)))
    w2p = jnp.pad(w2.astype(compute_dtype), ((0, phid - dim), (0, pout - output_dim)))
    b1p = jnp.pad(b1.astype(jnp.float32), (0, phid - dim)).reshape(1, phid)
    b2p = jnp.pad(b2.astype(jnp.float32), (0, pout - output_dim)).reshape(1, pout)
    return FFParams(w1p, b1p, w2p, b2p, input_dim, dim, output_dim)


# ----------------------------------------------------------------------------- wrapper


def feedforward_prepared(x, params: FFParams, *, tile_n=None, approx_gelu=False):
    """Fused MLP: GELU(x @ w1 + b1) @ w2 + b2, with pre-padded params."""
    orig_dtype = x.dtype
    input_dim = params.input_dim
    output_dim = params.output_dim
    assert x.shape[-1] == input_dim
    lead_shape = x.shape[:-1]
    n = math.prod(lead_shape) if lead_shape else 1

    cdt = params.w1p.dtype
    cbytes = jnp.dtype(cdt).itemsize
    obytes = jnp.dtype(orig_dtype).itemsize
    pin, phid = params.w1p.shape
    pout = params.w2p.shape[1]

    # Hidden-dim chunk: largest 128-multiple divisor of phid that is <= 512.
    hid_chunk = 128
    for c in (512, 384, 256, 128):
        if phid % c == 0:
            hid_chunk = c
            break

    # bf16 rows pack 2-per-sublane: row tile must be a multiple of 16 (8 for f32).
    row_align = 16 if cbytes == 2 else 8

    vmem_cap = _vmem_capacity_bytes()
    vmem_budget = int(0.85 * vmem_cap)

    weight_bytes = (pin * phid + phid * pout) * cbytes + (phid + pout) * 4  # single-buffered

    def footprint(tn):
        return (weight_bytes
                + 2 * tn * pin * cbytes      # double-buffered x tiles
                + 2 * tn * pout * obytes     # double-buffered out tiles
                + tn * pout * 4              # f32 accumulator scratch
                + 2 * tn * hid_chunk * 4)    # live f32 hidden chunk (+ headroom)

    if tile_n is None:
        base = 512  # big tiles amortize the ~0.35us per-grid-step overhead
        num_tiles = max(1, _cdiv(n, base))
        if n >= 256:
            num_tiles = max(num_tiles, 2)  # >=2 grid steps so v7x's 2 TCs both get work
        tile_n = _round_up(_cdiv(n, num_tiles), row_align)
    else:
        tile_n = _round_up(tile_n, row_align)
    # Shrink the row tile until the kernel fits in the VMEM budget.
    while tile_n > row_align and footprint(tile_n) > vmem_budget:
        tile_n = max(row_align, _round_up(tile_n // 2, row_align))
    # TODO(synk): if the resident weights alone exceed the VMEM budget (very large dim
    # on v7x's 64 MiB), add an "arbitrary" grid axis over the hidden dim streaming W1
    # column-blocks / W2 row-blocks into the f32 accumulator instead of keeping both
    # weights fully resident.

    grid_n = _cdiv(n, tile_n)
    n_pad = grid_n * tile_n

    x2 = x.reshape(n, input_dim)
    if x2.dtype != cdt:
        x2 = x2.astype(cdt)
    if n_pad != n or pin != input_dim:
        # Zero padding is exact: padded rows/cols contribute 0 and are sliced off.
        x2 = jnp.pad(x2, ((0, n_pad - n), (0, pin - input_dim)))

    vmem_limit = int(min(max(int(footprint(tile_n) * 1.25), 16 * 1024 * 1024),
                         int(0.9 * vmem_cap)))

    cost = pl.CostEstimate(
        flops=2 * n_pad * (pin * phid + phid * pout),
        transcendentals=n_pad * phid,
        bytes_accessed=int((n_pad * pin + pin * phid + phid * pout) * cbytes
                           + (phid + pout) * 4
                           + n_pad * pout * obytes),
    )

    kernel = functools.partial(feedforward_kernel, hid_chunk=hid_chunk,
                               approx_gelu=approx_gelu)
    resident = pl.Buffered(1)  # constant-index blocks: single-buffer (halve weight VMEM)

    out = pl.pallas_call(
        kernel,
        out_shape=jax.ShapeDtypeStruct((n_pad, pout), orig_dtype),
        grid_spec=pltpu.PrefetchScalarGridSpec(
            num_scalar_prefetch=0,
            grid=(grid_n,),
            in_specs=[
                pl.BlockSpec((tile_n, pin), lambda i: (i, 0)),                        # x tile
                pl.BlockSpec((pin, phid), lambda i: (0, 0), pipeline_mode=resident),  # w1
                pl.BlockSpec((1, phid), lambda i: (0, 0), pipeline_mode=resident),    # b1
                pl.BlockSpec((phid, pout), lambda i: (0, 0), pipeline_mode=resident), # w2
                pl.BlockSpec((1, pout), lambda i: (0, 0), pipeline_mode=resident),    # b2
            ],
            out_specs=pl.BlockSpec((tile_n, pout), lambda i: (i, 0)),
            scratch_shapes=[pltpu.VMEM((tile_n, pout), jnp.float32)],
        ),
        compiler_params=pltpu.CompilerParams(
            dimension_semantics=("parallel",),
            vmem_limit_bytes=vmem_limit,
        ),
        cost_estimate=cost,
    )(x2, params.w1p, params.b1p, params.w2p, params.b2p)

    out = out[:n, :output_dim]
    return out.reshape(*lead_shape, output_dim)


def feedforward(x, w1, b1, w2, b2, *, tile_n=None, compute_dtype=None,
                approx_gelu=False):
    """Convenience wrapper (pads/casts weights inline). Prefer prepare_params() +
    feedforward_prepared() in a hot loop."""
    if compute_dtype is None:
        # bf16 MXU operands by default for f32 inputs (f32 accumulation + f32 epilogue).
        compute_dtype = jnp.bfloat16 if x.dtype == jnp.float32 else x.dtype
    params = prepare_params(w1, b1, w2, b2, compute_dtype=compute_dtype)
    return feedforward_prepared(x, params, tile_n=tile_n, approx_gelu=approx_gelu)


# ----------------------------------------------------------------------------- init / ref


def init_params(key, input_dim, dim, output_dim, dtype=jnp.float32):
    """Deterministic init mimicking nn.Linear's kaiming-uniform (U[-1/sqrt(fan_in), ...])."""
    k1, k2, k3, k4 = jax.random.split(key, 4)
    lim1 = 1.0 / math.sqrt(input_dim)
    lim2 = 1.0 / math.sqrt(dim)
    # stored as [in, out] (transposed vs. torch's [out, in]) so kernel does x @ w
    w1 = jax.random.uniform(k1, (input_dim, dim), dtype, -lim1, lim1)
    b1 = jax.random.uniform(k2, (dim,), dtype, -lim1, lim1)
    w2 = jax.random.uniform(k3, (dim, output_dim), dtype, -lim2, lim2)
    b2 = jax.random.uniform(k4, (output_dim,), dtype, -lim2, lim2)
    return w1, b1, w2, b2


def _ref(x, w1, b1, w2, b2):
    return _gelu(x @ w1 + b1) @ w2 + b2


if __name__ == "__main__":
    key = jax.random.PRNGKey(0)

    # --- Test 1: FeedForward(dim=32), default depth=1 (input_dim=output_dim=dim=32),
    #             f32 compute for exactness vs. reference ---
    B, S, DIM = 2, 8, 32
    kx, kp, key = jax.random.split(key, 3)
    x = jax.random.normal(kx, (B, S, DIM), jnp.float32)
    w1, b1, w2, b2 = init_params(kp, DIM, DIM, DIM)
    out = jax.block_until_ready(
        feedforward(x, w1, b1, w2, b2, compute_dtype=jnp.float32))
    ref = _ref(x, w1, b1, w2, b2)
    assert out.shape == (B, S, DIM)
    assert jnp.allclose(out, ref, atol=1e-5, rtol=1e-5), "f32 small-shape mismatch"

    # --- Test 2: ragged N + non-128-aligned feature dims (padding + multi-tile grid) ---
    B2, S2, IN2, HID2, OUT2 = 3, 100, 48, 96, 64
    kx2, kp2, key = jax.random.split(key, 3)
    x2 = jax.random.normal(kx2, (B2, S2, IN2), jnp.float32)
    p2 = init_params(kp2, IN2, HID2, OUT2)
    out2 = jax.block_until_ready(
        feedforward(x2, *p2, compute_dtype=jnp.float32))
    ref2 = _ref(x2, *p2)
    assert out2.shape == (B2, S2, OUT2)
    assert jnp.allclose(out2, ref2, atol=1e-5, rtol=1e-5), "f32 ragged-shape mismatch"

    # --- Test 3: default bf16 MXU path via pre-prepared (hoisted) params,
    #             multi-tile grid, f32 accumulation (looser tolerance) ---
    B3, S3, DIM3 = 2, 512, 256
    kx3, kp3, key = jax.random.split(key, 3)
    x3 = jax.random.normal(kx3, (B3, S3, DIM3), jnp.float32)
    p3 = init_params(kp3, DIM3, DIM3, DIM3)
    prepped = prepare_params(*p3)  # bf16 default, padded/cast once
    out3 = jax.block_until_ready(feedforward_prepared(x3, prepped))
    ref3 = _ref(x3, *p3)
    assert out3.shape == (B3, S3, DIM3)
    assert bool(jnp.all(jnp.isfinite(out3)))
    assert float(jnp.max(jnp.abs(out3 - ref3))) < 0.1, "bf16 path diverged from f32 reference"

    print("KERNEL_OK")
</pallas_src>

<mosaic_0001>
module attributes {stable_mosaic.version = 11 : i64} {
  func.func @feedforward_kernel(%arg0: i32, %arg1: memref<16x128xf32, #tpu.memory_space<vmem>>, %arg2: memref<128x128xf32, #tpu.memory_space<vmem>>, %arg3: memref<1x128xf32, #tpu.memory_space<vmem>>, %arg4: memref<128x128xf32, #tpu.memory_space<vmem>>, %arg5: memref<1x128xf32, #tpu.memory_space<vmem>>, %arg6: memref<16x128xf32, #tpu.memory_space<vmem>>, %arg7: memref<16x128xf32, #tpu.memory_space<vmem>>) attributes {dimension_semantics = [#tpu.dimension_semantics<parallel>], iteration_bounds = array<i64: 1>, scalar_prefetch = 0 : i64, scratch_operands = 1 : i64, tpu.core_type = #tpu.core_type<tc>, window_params = [{transform_indices = @transform_0, window_bounds = array<i64: 16, 128>}, {pipeline_mode = #tpu.pipeline_mode<synchronous>, transform_indices = @transform_1, window_bounds = array<i64: 128, 128>}, {pipeline_mode = #tpu.pipeline_mode<synchronous>, transform_indices = @transform_2, window_bounds = array<i64: 1, 128>}, {pipeline_mode = #tpu.pipeline_mode<synchronous>, transform_indices = @transform_3, window_bounds = array<i64: 128, 128>}, {pipeline_mode = #tpu.pipeline_mode<synchronous>, transform_indices = @transform_4, window_bounds = array<i64: 1, 128>}, {transform_indices = @transform_5, window_bounds = array<i64: 16, 128>}]} {
    %c0 = arith.constant 0 : index
    %c0_0 = arith.constant 0 : index
    %0 = vector.load %arg1[%c0, %c0_0] : memref<16x128xf32, #tpu.memory_space<vmem>>, vector<16x128xf32>
    %c0_1 = arith.constant 0 : index
    %c0_2 = arith.constant 0 : index
    %1 = vector.load %arg5[%c0_1, %c0_2] : memref<1x128xf32, #tpu.memory_space<vmem>>, vector<1x128xf32>
    %2 = vector.shape_cast %1 : vector<1x128xf32> to vector<1x128xf32>
    %3 = vector.broadcast %2 : vector<1x128xf32> to vector<16x128xf32>
    %c0_3 = arith.constant 0 : index
    %c0_4 = arith.constant 0 : index
    %4 = vector.load %arg7[%c0_3, %c0_4] : memref<16x128xf32, #tpu.memory_space<vmem>>, vector<16x128xf32>
    tpu.vector_store %arg7[%c0_3, %c0_4], %3 {strides = array<i32>} : memref<16x128xf32, #tpu.memory_space<vmem>>, vector<16x128xf32>,
    %c0_5 = arith.constant 0 : index
    %c0_6 = arith.constant 0 : index
    %5 = vector.load %arg2[%c0_5, %c0_6] : memref<128x128xf32, #tpu.memory_space<vmem>>, vector<128x128xf32>
    %cst = arith.constant dense<0.000000e+00> : vector<16x128xf32>
    %6 = tpu.matmul %0, %5, %cst {dimension_numbers = #tpu.dot_dimension_numbers<[1], [0], [0], [1], [0, 0, 1, 1], [], []>} : vector<16x128xf32>, vector<128x128xf32>, vector<16x128xf32> -> vector<16x128xf32>
    %c0_7 = arith.constant 0 : index
    %c0_8 = arith.constant 0 : index
    %7 = vector.load %arg3[%c0_7, %c0_8] : memref<1x128xf32, #tpu.memory_space<vmem>>, vector<1x128xf32>
    %8 = vector.broadcast %7 : vector<1x128xf32> to vector<16x128xf32>
    %9 = arith.addf %6, %8 : vector<16x128xf32>
    %cst_9 = arith.constant 5.000000e-01 : f32
    %10 = vector.broadcast %cst_9 : f32 to vector<16x128xf32>
    %11 = arith.mulf %10, %9 : vector<16x128xf32>
    %cst_10 = arith.constant 0.707106769 : f32
    %12 = vector.broadcast %cst_10 : f32 to vector<16x128xf32>
    %13 = arith.mulf %9, %12 : vector<16x128xf32>
    %14 = math.erf %13 : vector<16x128xf32>
    %cst_11 = arith.constant 1.000000e+00 : f32
    %15 = vector.broadcast %cst_11 : f32 to vector<16x128xf32>
    %16 = arith.addf %15, %14 : vector<16x128xf32>
    %17 = arith.mulf %11, %16 : vector<16x128xf32>
    %c0_12 = arith.constant 0 : index
    %c0_13 = arith.constant 0 : index
    %18 = vector.load %arg7[%c0_12, %c0_13] : memref<16x128xf32, #tpu.memory_space<vmem>>, vector<16x128xf32>
    %c0_14 = arith.constant 0 : index
    %c0_15 = arith.constant 0 : index
    %19 = vector.load %arg4[%c0_14, %c0_15] : memref<128x128xf32, #tpu.memory_space<vmem>>, vector<128x128xf32>
    %cst_16 = arith.constant dense<0.000000e+00> : vector<16x128xf32>
    %20 = tpu.matmul %17, %19, %cst_16 {dimension_numbers = #tpu.dot_dimension_numbers<[1], [0], [0], [1], [0, 0, 1, 1], [], []>} : vector<16x128xf32>, vector<128x128xf32>, vector<16x128xf32> -> vector<16x128xf32>
    %21 = arith.addf %18, %20 : vector<16x128xf32>
    %c0_17 = arith.constant 0 : index
    %c0_18 = arith.constant 0 : index
    %22 = vector.load %arg7[%c0_17, %c0_18] : memref<16x128xf32, #tpu.memory_space<vmem>>, vector<16x128xf32>
    tpu.vector_store %arg7[%c0_17, %c0_18], %21 {strides = array<i32>} : memref<16x128xf32, #tpu.memory_space<vmem>>, vector<16x128xf32>,
    %c0_19 = arith.constant 0 : index
    %c0_20 = arith.constant 0 : index
    %23 = vector.load %arg7[%c0_19, %c0_20] : memref<16x128xf32, #tpu.memory_space<vmem>>, vector<16x128xf32>
    %c0_21 = arith.constant 0 : index
    %c0_22 = arith.constant 0 : index
    %24 = vector.load %arg6[%c0_21, %c0_22] : memref<16x128xf32, #tpu.memory_space<vmem>>, vector<16x128xf32>
    tpu.vector_store %arg6[%c0_21, %c0_22], %23 {strides = array<i32>} : memref<16x128xf32, #tpu.memory_space<vmem>>, vector<16x128xf32>,
    return
  }
  func.func @transform_0(%arg0: i32) -> (i32, i32) {
    %c0_i32 = arith.constant 0 : i32
    %c0_i32_0 = arith.constant 0 : i32
    return %arg0, %c0_i32 : i32, i32
  }
  func.func @transform_1(%arg0: i32) -> (i32, i32) {
    %c0_i32 = arith.constant 0 : i32
    %c0_i32_0 = arith.constant 0 : i32
    %c0_i32_1 = arith.constant 0 : i32
    return %c0_i32, %c0_i32_0 : i32, i32
  }
  func.func @transform_2(%arg0: i32) -> (i32, i32) {
    %c0_i32 = arith.constant 0 : i32
    %c0_i32_0 = arith.constant 0 : i32
    %c0_i32_1 = arith.constant 0 : i32
    return %c0_i32, %c0_i32_0 : i32, i32
  }
  func.func @transform_3(%arg0: i32) -> (i32, i32) {
    %c0_i32 = arith.constant 0 : i32
    %c0_i32_0 = arith.constant 0 : i32
    %c0_i32_1 = arith.constant 0 : i32
    return %c0_i32, %c0_i32_0 : i32, i32
  }
  func.func @transform_4(%arg0: i32) -> (i32, i32) {
    %c0_i32 = arith.constant 0 : i32
    %c0_i32_0 = arith.constant 0 : i32
    %c0_i32_1 = arith.constant 0 : i32
    return %c0_i32, %c0_i32_0 : i32, i32
  }
  func.func @transform_5(%arg0: i32) -> (i32, i32) {
    %c0_i32 = arith.constant 0 : i32
    %c0_i32_0 = arith.constant 0 : i32
    return %arg0, %c0_i32 : i32, i32
  }
}

</mosaic_0001>

<llo_original>
// kernel: tpu_custom_call.1
$region0: #{tpu_custom_call.1}
  #allocation0 [shape = 'u32[]', space=smem, size = 0x4, offset = 0x4, fixed_abs, tag = 'smem constant byte address 0x4 - core index']
  #allocation1 [shape = 'u32[144,128]{1,0:T(1,128)}', space=vmem, size = 0x12000, scoped, tag = 'internal scratch']
  #allocation2 [shape = 'f32[16,128]{1,0:T(8,128)}', space=vmem, size = 0x2000, scoped, tag = 'scratch operand']
  %s0 = inlined_call_operand.hbm [shape: f32[16,128], index: 0, kind: input, shape index: {}]
  %s1 = inlined_call_operand.hbm [shape: f32[128,128], index: 1, kind: input, shape index: {}]
  %s2 = inlined_call_operand.vmem [shape: f32[1,128], index: 2, kind: input, shape index: {}]
  %s3 = inlined_call_operand.hbm [shape: f32[128,128], index: 3, kind: input, shape index: {}]
  %s4 = inlined_call_operand.vmem [shape: f32[1,128], index: 4, kind: input, shape index: {}]
  %s5 = inlined_call_operand.hbm [shape: f32[16,128], index: 5, kind: output, shape index: {}]
  %s6 = sld [smem:[#allocation0]]
  $region42: #{tpu_custom_call.1} parent=0
    _
  %s8 = ssub.s32 1, %s6
  %s9 = scalar_select 0, %s8, %s6
  $region1: #{tpu_custom_call.1} parent=0
    #allocation3 [shape = 'u8[8192]{0}', space=vmem, size = 0x2000, scoped, tag = 'input window, operand 0, single buffered']
    #allocation4 [shape = 's32[1]{0}', space=sflag, size = 0x4, scoped, tag = 'scoped memory for tpu_custom_call.1']
    #allocation5 [shape = 's32[1]{0}', space=sflag, size = 0x4, scoped, tag = 'scoped memory for tpu_custom_call.1']
    #allocation6 [shape = 'u8[65536]{0}', space=vmem, size = 0x10000, scoped, tag = 'input window, operand 1, single buffered']
    #allocation7 [shape = 's32[1]{0}', space=sflag, size = 0x4, scoped, tag = 'scoped memory for tpu_custom_call.1']
    #allocation8 [shape = 'u8[65536]{0}', space=vmem, size = 0x10000, scoped, tag = 'input window, operand 3, single buffered']
    #allocation9 [shape = 'u8[8192]{0}', space=vmem, size = 0x2000, scoped, tag = 'output window, operand 0, single buffered']
    %10 = vsyncpa [#allocation4], 0
    %11 = vsyncpa [#allocation7], 0
    %12 = vsyncpa [#allocation5], 0
    // Predicated region
    $region2: #{tpu_custom_call.1} parent=1 // pred_check
      _
    $region3: #{tpu_custom_call.1} parent=1 // pred_check_branch
      %14 = sbr.rel (0) target = $region5
    $region4: #{tpu_custom_call.1} parent=1 // pred_region
      %s16 = ssub.s32 256, 256
      %17 = vsyncadd [#allocation4], %s16
      %s18 = sshll.u32 [#allocation3], 4
      %s19 = int_to_ptr.vmem [resolvable:$true] %s18
      %24 = dma.hbm_to_vmem [thread:$0]  %s0, 256, %s19, [#allocation4], 128, 128, 8
    $region5: #{tpu_custom_call.1} parent=1 // pred_fallthru
      _
    // Predicated region
    $region6: #{tpu_custom_call.1} parent=1 // pred_check
      _
    $region7: #{tpu_custom_call.1} parent=1 // pred_check_branch
      %26 = sbr.rel (0) target = $region9
    $region8: #{tpu_custom_call.1} parent=1 // pred_region
      %s28 = ssub.s32 2048, 2048
      %29 = vsyncadd [#allocation7], %s28
      %s30 = sshll.u32 [#allocation6], 4
      %s31 = int_to_ptr.vmem [resolvable:$true] %s30
      %36 = dma.hbm_to_vmem [thread:$0]  %s1, 2048, %s31, [#allocation7], 128, 128, 8
    $region9: #{tpu_custom_call.1} parent=1 // pred_fallthru
      _
    // Predicated region
    $region10: #{tpu_custom_call.1} parent=1 // pred_check
      _
    $region11: #{tpu_custom_call.1} parent=1 // pred_check_branch
      %38 = sbr.rel (0) target = $region13
    $region12: #{tpu_custom_call.1} parent=1 // pred_region
      _
    $region13: #{tpu_custom_call.1} parent=1 // pred_fallthru
      _
    // Predicated region
    $region14: #{tpu_custom_call.1} parent=1 // pred_check
      _
    $region15: #{tpu_custom_call.1} parent=1 // pred_check_branch
      %40 = sbr.rel (0) target = $region17
    $region16: #{tpu_custom_call.1} parent=1 // pred_region
      %s42 = ssub.s32 2048, 2048
      %43 = vsyncadd [#allocation7], %s42
      %s44 = sshll.u32 [#allocation8], 4
      %s45 = int_to_ptr.vmem [resolvable:$true] %s44
      %50 = dma.hbm_to_vmem [thread:$0]  %s3, 2048, %s45, [#allocation7], 128, 128, 8
    $region17: #{tpu_custom_call.1} parent=1 // pred_fallthru
      _
    // Predicated region
    $region18: #{tpu_custom_call.1} parent=1 // pred_check
      _
    $region19: #{tpu_custom_call.1} parent=1 // pred_check_branch
      %52 = sbr.rel (0) target = $region21
    $region20: #{tpu_custom_call.1} parent=1 // pred_region
      _
    $region21: #{tpu_custom_call.1} parent=1 // pred_fallthru
      _
    // Predicated region
    $region22: #{tpu_custom_call.1} parent=1 // pred_check
      _
    $region23: #{tpu_custom_call.1} parent=1 // pred_check_branch
      %54 = sbr.rel (0) target = $region25
    $region24: #{tpu_custom_call.1} parent=1 // pred_region
      %55 = dma.done [#allocation4], 256
    $region25: #{tpu_custom_call.1} parent=1 // pred_fallthru
      _
    // Predicated region
    $region26: #{tpu_custom_call.1} parent=1 // pred_check
      _
    $region27: #{tpu_custom_call.1} parent=1 // pred_check_branch
      %57 = sbr.rel (0) target = $region29
    $region28: #{tpu_custom_call.1} parent=1 // pred_region
      %58 = dma.done [#allocation7], 2048
    $region29: #{tpu_custom_call.1} parent=1 // pred_fallthru
      _
    // Predicated region
    $region30: #{tpu_custom_call.1} parent=1 // pred_check
      _
    $region31: #{tpu_custom_call.1} parent=1 // pred_check_branch
      %60 = sbr.rel (0) target = $region33
    $region32: #{tpu_custom_call.1} parent=1 // pred_region
      %61 = dma.done [#allocation7], 2048
    $region33: #{tpu_custom_call.1} parent=1 // pred_fallthru
      _
    %v62 = vld [vmem:[#allocation3] sm:$0xff]
    %v63 = vld [vmem:[#allocation3 + $0x8] sm:$0xff]
    %v64 = vld [vmem:[%s4] sm:$0x1]
    %v66 = vlaneseq
    %v67 = vshrl.u32 %v66, 7
    %v68 = vsub.s32 0, %v67
    %v69 = vrot.slane %v64, %v68
    %71 = vst [vmem:[#allocation2] sm:$0xff] %v69
    %72 = vst [vmem:[#allocation2 + $0x8] sm:$0xff] %v69
    %v73 = vld [vmem:[#allocation6] sm:$0xff]
    %v74 = vld [vmem:[#allocation6 + $0x8] sm:$0xff]
    %v75 = vld [vmem:[#allocation6 + $0x10] sm:$0xff]
    %v76 = vld [vmem:[#allocation6 + $0x18] sm:$0xff]
    %v77 = vld [vmem:[#allocation6 + $0x20] sm:$0xff]
    %v78 = vld [vmem:[#allocation6 + $0x28] sm:$0xff]
    %v79 = vld [vmem:[#allocation6 + $0x30] sm:$0xff]
    %v80 = vld [vmem:[#allocation6 + $0x38] sm:$0xff]
    %v81 = vld [vmem:[#allocation6 + $0x40] sm:$0xff]
    %v82 = vld [vmem:[#allocation6 + $0x48] sm:$0xff]
    %v83 = vld [vmem:[#allocation6 + $0x50] sm:$0xff]
    %v84 = vld [vmem:[#allocation6 + $0x58] sm:$0xff]
    %v85 = vld [vmem:[#allocation6 + $0x60] sm:$0xff]
    %v86 = vld [vmem:[#allocation6 + $0x68] sm:$0xff]
    %v87 = vld [vmem:[#allocation6 + $0x70] sm:$0xff]
    %v88 = vld [vmem:[#allocation6 + $0x78] sm:$0xff]
    %v89 = vld [vmem:[%s2] sm:$0x1]
    %v91 = vlaneseq
    %v92 = vshrl.u32 %v91, 7
    %v93 = vsub.s32 0, %v92
    %v94 = vrot.slane %v89, %v93
    %96 = vmatprep.subr.mxu0 0.0
    %97 = vmatpush1.msra.mxu0 %v73
    %98 = vmatprep.subr.mxu0 0.0
    %99 = vmatpush1.msra.mxu0 %v74
    %100 = vmatprep.subr.mxu0 0.0
    %101 = vmatpush1.msra.mxu0 %v75
    %102 = vmatprep.subr.mxu0 0.0
    %103 = vmatpush1.msra.mxu0 %v76
    %104 = vmatprep.subr.mxu0 0.0
    %105 = vmatpush1.msra.mxu0 %v77
    %106 = vmatprep.subr.mxu0 0.0
    %107 = vmatpush1.msra.mxu0 %v78
    %108 = vmatprep.subr.mxu0 0.0
    %109 = vmatpush1.msra.mxu0 %v79
    %110 = vmatprep.subr.mxu0 0.0
    %111 = vmatpush1.msra.mxu0 %v80
    %112 = vmatprep.subr.mxu0 0.0
    %113 = vmatpush1.msra.mxu0 %v81
    %114 = vmatprep.subr.mxu0 0.0
    %115 = vmatpush1.msra.mxu0 %v82
    %116 = vmatprep.subr.mxu0 0.0
    %117 = vmatpush1.msra.mxu0 %v83
    %118 = vmatprep.subr.mxu0 0.0
    %119 = vmatpush1.msra.mxu0 %v84
    %120 = vmatprep.subr.mxu0 0.0
    %121 = vmatpush1.msra.mxu0 %v85
    %122 = vmatprep.subr.mxu0 0.0
    %123 = vmatpush1.msra.mxu0 %v86
    %124 = vmatprep.subr.mxu0 0.0
    %125 = vmatpush1.msra.mxu0 %v87
    %126 = vmatprep.subr.mxu0 0.0
    %127 = vmatpush1.msra.mxu0 %v88
    %128 = vmatprep.subr.mxu0 0.0
    %129 = vmatpush1.msra.mxu0 0.0
    %130 = vmatprep.subr.mxu0 0.0
    %131 = vmatpush1.msra.mxu0 0.0
    %132 = vmatprep.subr.mxu0 0.0
    %133 = vmatpush1.msra.mxu0 0.0
    %134 = vmatprep.subr.mxu0 0.0
    %135 = vmatpush1.msra.mxu0 0.0
    %136 = vmatprep.subr.mxu0 0.0
    %137 = vmatpush1.msra.mxu0 0.0
    %138 = vmatprep.subr.mxu0 0.0
    %139 = vmatpush1.msra.mxu0 0.0
    %140 = vmatprep.subr.mxu0 0.0
    %141 = vmatpush1.msra.mxu0 0.0
    %142 = vmatprep.subr.mxu0 0.0
    %143 = vmatpush1.msra.mxu0 0.0
    %144 = vmatprep.subr.mxu0 0.0
    %145 = vmatpush1.msra.mxu0 0.0
    %146 = vmatprep.subr.mxu0 0.0
    %147 = vmatpush1.msra.mxu0 0.0
    %148 = vmatprep.subr.mxu0 0.0
    %149 = vmatpush1.msra.mxu0 0.0
    %150 = vmatprep.subr.mxu0 0.0
    %151 = vmatpush1.msra.mxu0 0.0
    %152 = vmatprep.subr.mxu0 0.0
    %153 = vmatpush1.msra.mxu0 0.0
    %154 = vmatprep.subr.mxu0 0.0
    %155 = vmatpush1.msra.mxu0 0.0
    %156 = vmatprep.subr.mxu0 0.0
    %157 = vmatpush1.msra.mxu0 0.0
    %158 = vmatprep.subr.mxu0 0.0
    %159 = vmatpush1.msra.mxu0 0.0
    %160 = vmatprep.mubr.f32.mxu0 0.0
    %161 = vmatmul.mubr.f32.gmra.mrb[0].mxu0 %v62
    %v162 = vpop.f32.mrb[0].mxu0
    %v163 = vadd.f32 %v94, %v162
    %v164 = vpop.f32.mrb[0].mxu0
    %165 = vmatprep.mubr.f32.mxu0 0.0
    %166 = vmatmul.mubr.f32.gmra.mrb[0].mxu0 %v63
    %v167 = vpop.f32.mrb[0].mxu0
    %v168 = vadd.f32 %v94, %v167
    %v169 = vpop.f32.mrb[0].mxu0
    %170 = vdwg.mxu0
    %v171 = vmul.f32 %v163, 0.5
    %v172 = vmul.f32 %v168, 0.5
    %v173 = vmul.f32 %v163, 0.70710677
    %v174 = vmul.f32 %v168, 0.70710677
    %v175 = verf.f32.pop %v173
    %v176 = verf.f32.pop %v174
    %v177 = vadd.f32 %v175, 1.0
    %v178 = vadd.f32 %v176, 1.0
    %v179 = vmul.f32 %v171, %v177
    %v180 = vmul.f32 %v172, %v178
    %v181 = vld [vmem:[#allocation2] sm:$0xff]
    %v182 = vld [vmem:[#allocation2 + $0x8] sm:$0xff]
    %v183 = vld [vmem:[#allocation8] sm:$0xff]
    %v184 = vld [vmem:[#allocation8 + $0x8] sm:$0xff]
    %v185 = vld [vmem:[#allocation8 + $0x10] sm:$0xff]
    %v186 = vld [vmem:[#allocation8 + $0x18] sm:$0xff]
    %v187 = vld [vmem:[#allocation8 + $0x20] sm:$0xff]
    %v188 = vld [vmem:[#allocation8 + $0x28] sm:$0xff]
    %v189 = vld [vmem:[#allocation8 + $0x30] sm:$0xff]
    %v190 = vld [vmem:[#allocation8 + $0x38] sm:$0xff]
    %v191 = vld [vmem:[#allocation8 + $0x40] sm:$0xff]
    %v192 = vld [vmem:[#allocation8 + $0x48] sm:$0xff]
    %v193 = vld [vmem:[#allocation8 + $0x50] sm:$0xff]
    %v194 = vld [vmem:[#allocation8 + $0x58] sm:$0xff]
    %v195 = vld [vmem:[#allocation8 + $0x60] sm:$0xff]
    %v196 = vld [vmem:[#allocation8 + $0x68] sm:$0xff]
    %v197 = vld [vmem:[#allocation8 + $0x70] sm:$0xff]
    %v198 = vld [vmem:[#allocation8 + $0x78] sm:$0xff]
    %199 = vmatprep.subr.mxu0 0.0
    %200 = vmatpush1.msra.mxu0 %v183
    %201 = vmatprep.subr.mxu0 0.0
    %202 = vmatpush1.msra.mxu0 %v184
    %203 = vmatprep.subr.mxu0 0.0
    %204 = vmatpush1.msra.mxu0 %v185
    %205 = vmatprep.subr.mxu0 0.0
    %206 = vmatpush1.msra.mxu0 %v186
    %207 = vmatprep.subr.mxu0 0.0
    %208 = vmatpush1.msra.mxu0 %v187
    %209 = vmatprep.subr.mxu0 0.0
    %210 = vmatpush1.msra.mxu0 %v188
    %211 = vmatprep.subr.mxu0 0.0
    %212 = vmatpush1.msra.mxu0 %v189
    %213 = vmatprep.subr.mxu0 0.0
    %214 = vmatpush1.msra.mxu0 %v190
    %215 = vmatprep.subr.mxu0 0.0
    %216 = vmatpush1.msra.mxu0 %v191
    %217 = vmatprep.subr.mxu0 0.0
    %218 = vmatpush1.msra.mxu0 %v192
    %219 = vmatprep.subr.mxu0 0.0
    %220 = vmatpush1.msra.mxu0 %v193
    %221 = vmatprep.subr.mxu0 0.0
    %222 = vmatpush1.msra.mxu0 %v194
    %223 = vmatprep.subr.mxu0 0.0
    %224 = vmatpush1.msra.mxu0 %v195
    %225 = vmatprep.subr.mxu0 0.0
    %226 = vmatpush1.msra.mxu0 %v196
    %227 = vmatprep.subr.mxu0 0.0
    %228 = vmatpush1.msra.mxu0 %v197
    %229 = vmatprep.subr.mxu0 0.0
    %230 = vmatpush1.msra.mxu0 %v198
    %231 = vmatprep.subr.mxu0 0.0
    %232 = vmatpush1.msra.mxu0 0.0
    %233 = vmatprep.subr.mxu0 0.0
    %234 = vmatpush1.msra.mxu0 0.0
    %235 = vmatprep.subr.mxu0 0.0
    %236 = vmatpush1.msra.mxu0 0.0
    %237 = vmatprep.subr.mxu0 0.0
    %238 = vmatpush1.msra.mxu0 0.0
    %239 = vmatprep.subr.mxu0 0.0
    %240 = vmatpush1.msra.mxu0 0.0
    %241 = vmatprep.subr.mxu0 0.0
    %242 = vmatpush1.msra.mxu0 0.0
    %243 = vmatprep.subr.mxu0 0.0
    %244 = vmatpush1.msra.mxu0 0.0
    %245 = vmatprep.subr.mxu0 0.0
    %246 = vmatpush1.msra.mxu0 0.0
    %247 = vmatprep.subr.mxu0 0.0
    %248 = vmatpush1.msra.mxu0 0.0
    %249 = vmatprep.subr.mxu0 0.0
    %250 = vmatpush1.msra.mxu0 0.0
    %251 = vmatprep.subr.mxu0 0.0
    %252 = vmatpush1.msra.mxu0 0.0
    %253 = vmatprep.subr.mxu0 0.0
    %254 = vmatpush1.msra.mxu0 0.0
    %255 = vmatprep.subr.mxu0 0.0
    %256 = vmatpush1.msra.mxu0 0.0
    %257 = vmatprep.subr.mxu0 0.0
    %258 = vmatpush1.msra.mxu0 0.0
    %259 = vmatprep.subr.mxu0 0.0
    %260 = vmatpush1.msra.mxu0 0.0
    %261 = vmatprep.subr.mxu0 0.0
    %262 = vmatpush1.msra.mxu0 0.0
    %263 = vmatprep.mubr.f32.mxu0 0.0
    %264 = vmatmul.mubr.f32.gmra.mrb[0].mxu0 %v179
    %v265 = vpop.f32.mrb[0].mxu0
    %v266 = vadd.f32 0.0, %v265
    %v267 = vpop.f32.mrb[0].mxu0
    %268 = vmatprep.mubr.f32.mxu0 0.0
    %269 = vmatmul.mubr.f32.gmra.mrb[0].mxu0 %v180
    %v270 = vpop.f32.mrb[0].mxu0
    %v271 = vadd.f32 0.0, %v270
    %v272 = vpop.f32.mrb[0].mxu0
    %273 = vdwg.mxu0
    %v274 = vadd.f32 %v181, %v266
    %v275 = vadd.f32 %v182, %v271
    %276 = vst [vmem:[#allocation2] sm:$0xff] %v274
    %277 = vst [vmem:[#allocation2 + $0x8] sm:$0xff] %v275
    %v278 = vld [vmem:[#allocation2] sm:$0xff]
    %v279 = vld [vmem:[#allocation2 + $0x8] sm:$0xff]
    %280 = vst [vmem:[#allocation9] sm:$0xff] %v278
    %281 = vst [vmem:[#allocation9 + $0x8] sm:$0xff] %v279
    // Predicated region
    $region34: #{tpu_custom_call.1} parent=1 // pred_check
      _
    $region35: #{tpu_custom_call.1} parent=1 // pred_check_branch
      %283 = sbr.rel (0) target = $region37
    $region36: #{tpu_custom_call.1} parent=1 // pred_region
      %s285 = ssub.s32 256, 256
      %286 = vsyncadd [#allocation5], %s285
      %s287 = sshll.u32 [#allocation9], 4
      %s288 = int_to_ptr.vmem [resolvable:$true] %s287
      %293 = dma.vmem_to_hbm [thread:$0]  %s288, 256, %s5, [#allocation5], 128, 128, 8
    $region37: #{tpu_custom_call.1} parent=1 // pred_fallthru
      _
    // Predicated region
    $region38: #{tpu_custom_call.1} parent=1 // pred_check
      _
    $region39: #{tpu_custom_call.1} parent=1 // pred_check_branch
      %295 = sbr.rel (0) target = $region41
    $region40: #{tpu_custom_call.1} parent=1 // pred_region
      %296 = dma.done [#allocation5], 256
    $region41: #{tpu_custom_call.1} parent=1 // pred_fallthru
      _
    %297 = vsyncpa [#allocation4], 1
    %298 = vsyncpa [#allocation7], 1
    %299 = vsyncpa [#allocation5], 1

</llo_original>
